<compile_context>
chip_gen: v7x
topology: tpu7x:2x2x1
jax: 0.10.0
libtpu: 0.0.40
codegen_flags: <defaults>
</compile_context>

<pallas_src>
import functools

import jax
import jax.numpy as jnp
from jax.experimental import pallas as pl
from jax.experimental.pallas import tpu as pltpu

Z_DIM = 64
H1 = 128
H2 = 256
IMG_DIM = 28 * 28 * 1                                  # 784 (not lane-aligned)
LANE = 128
IMG_PAD = ((IMG_DIM + LANE - 1) // LANE) * LANE        # 896 = 7 * 128
N_CHUNK = 128                                          # layer-3 output column chunk


def _leaky_relu(x, slope=0.01):
    return jnp.where(x > 0, x, slope * x)


def _round_up(n, m):
    return (n + m - 1) // m * m


def generator_kernel(x_ref, w1_ref, b1_ref, w2_ref, b2_ref, w3_ref, b3_ref,
                     o_ref):
    # Layers 1 & 2: MXU matmuls with f32 accumulation, LeakyReLU on the VPU.
    x = x_ref[...].astype(w1_ref.dtype)

    h1 = jnp.dot(x, w1_ref[...], preferred_element_type=jnp.float32)
    h1 = _leaky_relu(h1 + b1_ref[...]).astype(w2_ref.dtype)

    h2 = jnp.dot(h1, w2_ref[...], preferred_element_type=jnp.float32)
    h2 = _leaky_relu(h2 + b2_ref[...]).astype(w3_ref.dtype)

    # Layer 3: output columns are lane-padded (896 = 7*128) and processed in
    # 128-lane chunks so the live f32 intermediate stays small and every
    # store is a full, unmasked 128-lane vst directly into o_ref.
    for c in range(IMG_PAD // N_CHUNK):
        sl = pl.ds(c * N_CHUNK, N_CHUNK)
        h3 = jnp.dot(h2, w3_ref[:, sl], preferred_element_type=jnp.float32)
        o_ref[:, sl] = jnp.tanh(h3 + b3_ref[:, sl]).astype(o_ref.dtype)


@functools.partial(jax.jit, static_argnames=("tb",))
def generator_forward(x, params, *, tb=256):
    """x: (B, Z_DIM) float32, params: dict of weights/biases. Returns (B, IMG_DIM)."""
    w1, b1, w2, b2, w3, b3 = (params["w1"], params["b1"], params["w2"],
                              params["b2"], params["w3"], params["b3"])
    assert tb % 8 == 0, "batch tile must be a multiple of the 8-row sublane"

    B = x.shape[0]
    # Clamp the batch tile to the (sublane-rounded) batch, then pad the batch
    # so the 1-D grid divides evenly.  Large batches get 256-row tiles (near
    # the measured roofline knee); multiple grid steps shard over megacore.
    b8 = _round_up(B, 8)
    tb_eff = min(tb, b8)
    b_pad = _round_up(b8, tb_eff)
    if b_pad != B:
        x = jnp.pad(x, ((0, b_pad - B), (0, 0)))

    # Lane-pad the 784-wide third layer to 896 with zero columns (padded
    # columns produce tanh(0) = 0 and are sliced away below).
    w3p = jnp.pad(w3, ((0, 0), (0, IMG_PAD - IMG_DIM)))
    b3p = jnp.pad(b3, ((0, 0), (0, IMG_PAD - IMG_DIM)))

    grid = (b_pad // tb_eff,)

    # Weights/biases are ~1.1 MiB total -> keep the full tensors resident for
    # every grid step; only the batch dimension of x / out is tiled.
    full = lambda shape: pl.BlockSpec(shape, lambda i: (0, 0))

    flops = 2 * b_pad * (Z_DIM * H1 + H1 * H2 + H2 * IMG_PAD)
    bytes_accessed = 4 * (b_pad * (Z_DIM + IMG_PAD)
                          + Z_DIM * H1 + H1
                          + H1 * H2 + H2
                          + H2 * IMG_PAD + IMG_PAD)

    out = pl.pallas_call(
        generator_kernel,
        out_shape=jax.ShapeDtypeStruct((b_pad, IMG_PAD), jnp.float32),
        grid_spec=pltpu.PrefetchScalarGridSpec(
            num_scalar_prefetch=0,
            grid=grid,
            in_specs=[
                pl.BlockSpec((tb_eff, Z_DIM), lambda i: (i, 0)),  # x tile
                full((Z_DIM, H1)),     # w1
                full((1, H1)),         # b1
                full((H1, H2)),        # w2
                full((1, H2)),         # b2
                full((H2, IMG_PAD)),   # w3 (lane-padded)
                full((1, IMG_PAD)),    # b3 (lane-padded)
            ],
            out_specs=pl.BlockSpec((tb_eff, IMG_PAD), lambda i: (i, 0)),
        ),
        compiler_params=pltpu.CompilerParams(
            dimension_semantics=("parallel",),
            vmem_limit_bytes=32 * 1024 * 1024),
        cost_estimate=pl.CostEstimate(
            flops=flops,
            transcendentals=b_pad * IMG_PAD,   # tanh on the EUP
            bytes_accessed=bytes_accessed),
    )(x, w1, b1, w2, b2, w3p, b3p)

    return out[:B, :IMG_DIM]


def init_params(key):
    """Deterministic init mirroring nn.Linear's uniform(-1/sqrt(fan_in), +)."""
    ks = jax.random.split(key, 6)

    def lin(kw, kb, fan_in, fan_out):
        bound = 1.0 / jnp.sqrt(fan_in)
        w = jax.random.uniform(kw, (fan_in, fan_out), jnp.float32,
                               -bound, bound)
        b = jax.random.uniform(kb, (1, fan_out), jnp.float32, -bound, bound)
        return w, b

    w1, b1 = lin(ks[0], ks[1], Z_DIM, H1)
    w2, b2 = lin(ks[2], ks[3], H1, H2)
    w3, b3 = lin(ks[4], ks[5], H2, IMG_DIM)
    return dict(w1=w1, b1=b1, w2=w2, b2=b2, w3=w3, b3=b3)


def reference_forward(x, p):
    h1 = _leaky_relu(x @ p["w1"] + p["b1"])
    h2 = _leaky_relu(h1 @ p["w2"] + p["b2"])
    return jnp.tanh(h2 @ p["w3"] + p["b3"])


if __name__ == "__main__":
    key = jax.random.PRNGKey(0)
    k_param, k_x = jax.random.split(key)

    params = init_params(k_param)

    B = 16  # small test batch; tb clamps to 16 here, 256 tiles at real batch sizes
    x = jax.random.normal(k_x, (B, Z_DIM), jnp.float32)

    out = generator_forward(x, params)
    out = jax.block_until_ready(out)

    ref = reference_forward(x, params)
    assert out.shape == (B, IMG_DIM), out.shape
    assert jnp.allclose(out, ref, atol=1e-5, rtol=1e-5), \
        float(jnp.max(jnp.abs(out - ref)))

    print("KERNEL_OK")
</pallas_src>

<mosaic_0001>
module attributes {stable_mosaic.version = 11 : i64} {
  func.func @generator_kernel(%arg0: i32, %arg1: memref<16x64xf32, #tpu.memory_space<vmem>>, %arg2: memref<64x128xf32, #tpu.memory_space<vmem>>, %arg3: memref<1x128xf32, #tpu.memory_space<vmem>>, %arg4: memref<128x256xf32, #tpu.memory_space<vmem>>, %arg5: memref<1x256xf32, #tpu.memory_space<vmem>>, %arg6: memref<256x896xf32, #tpu.memory_space<vmem>>, %arg7: memref<1x896xf32, #tpu.memory_space<vmem>>, %arg8: memref<16x896xf32, #tpu.memory_space<vmem>>) attributes {dimension_semantics = [#tpu.dimension_semantics<parallel>], iteration_bounds = array<i64: 1>, scalar_prefetch = 0 : i64, scratch_operands = 0 : i64, tpu.core_type = #tpu.core_type<tc>, window_params = [{transform_indices = @transform_0, window_bounds = array<i64: 16, 64>}, {pipeline_mode = #tpu.pipeline_mode<synchronous>, transform_indices = @transform_1, window_bounds = array<i64: 64, 128>}, {pipeline_mode = #tpu.pipeline_mode<synchronous>, transform_indices = @transform_2, window_bounds = array<i64: 1, 128>}, {pipeline_mode = #tpu.pipeline_mode<synchronous>, transform_indices = @transform_3, window_bounds = array<i64: 128, 256>}, {pipeline_mode = #tpu.pipeline_mode<synchronous>, transform_indices = @transform_4, window_bounds = array<i64: 1, 256>}, {pipeline_mode = #tpu.pipeline_mode<synchronous>, transform_indices = @transform_5, window_bounds = array<i64: 256, 896>}, {pipeline_mode = #tpu.pipeline_mode<synchronous>, transform_indices = @transform_6, window_bounds = array<i64: 1, 896>}, {transform_indices = @transform_7, window_bounds = array<i64: 16, 896>}]} {
    %c0 = arith.constant 0 : index
    %c0_0 = arith.constant 0 : index
    %0 = vector.load %arg1[%c0, %c0_0] : memref<16x64xf32, #tpu.memory_space<vmem>>, vector<16x64xf32>
    %c0_1 = arith.constant 0 : index
    %c0_2 = arith.constant 0 : index
    %1 = vector.load %arg2[%c0_1, %c0_2] : memref<64x128xf32, #tpu.memory_space<vmem>>, vector<64x128xf32>
    %cst = arith.constant dense<0.000000e+00> : vector<16x128xf32>
    %2 = tpu.matmul %0, %1, %cst {dimension_numbers = #tpu.dot_dimension_numbers<[1], [0], [0], [1], [0, 0, 1, 1], [], []>} : vector<16x64xf32>, vector<64x128xf32>, vector<16x128xf32> -> vector<16x128xf32>
    %c0_3 = arith.constant 0 : index
    %c0_4 = arith.constant 0 : index
    %3 = vector.load %arg3[%c0_3, %c0_4] : memref<1x128xf32, #tpu.memory_space<vmem>>, vector<1x128xf32>
    %4 = vector.broadcast %3 : vector<1x128xf32> to vector<16x128xf32>
    %5 = arith.addf %2, %4 : vector<16x128xf32>
    %cst_5 = arith.constant 0.000000e+00 : f32
    %6 = vector.broadcast %cst_5 : f32 to vector<16x128xf32>
    %7 = arith.cmpf ogt, %5, %6 : vector<16x128xf32>
    %cst_6 = arith.constant 0.00999999977 : f32
    %8 = vector.broadcast %cst_6 : f32 to vector<16x128xf32>
    %9 = arith.mulf %8, %5 : vector<16x128xf32>
    %10 = arith.select %7, %5, %9 : vector<16x128xi1>, vector<16x128xf32>
    %c0_7 = arith.constant 0 : index
    %c0_8 = arith.constant 0 : index
    %11 = vector.load %arg4[%c0_7, %c0_8] : memref<128x256xf32, #tpu.memory_space<vmem>>, vector<128x256xf32>
    %cst_9 = arith.constant dense<0.000000e+00> : vector<16x256xf32>
    %12 = tpu.matmul %10, %11, %cst_9 {dimension_numbers = #tpu.dot_dimension_numbers<[1], [0], [0], [1], [0, 0, 1, 1], [], []>} : vector<16x128xf32>, vector<128x256xf32>, vector<16x256xf32> -> vector<16x256xf32>
    %c0_10 = arith.constant 0 : index
    %c0_11 = arith.constant 0 : index
    %13 = vector.load %arg5[%c0_10, %c0_11] : memref<1x256xf32, #tpu.memory_space<vmem>>, vector<1x256xf32>
    %14 = vector.broadcast %13 : vector<1x256xf32> to vector<16x256xf32>
    %15 = arith.addf %12, %14 : vector<16x256xf32>
    %cst_12 = arith.constant 0.000000e+00 : f32
    %16 = vector.broadcast %cst_12 : f32 to vector<16x256xf32>
    %17 = arith.cmpf ogt, %15, %16 : vector<16x256xf32>
    %cst_13 = arith.constant 0.00999999977 : f32
    %18 = vector.broadcast %cst_13 : f32 to vector<16x256xf32>
    %19 = arith.mulf %18, %15 : vector<16x256xf32>
    %20 = arith.select %17, %15, %19 : vector<16x256xi1>, vector<16x256xf32>
    %c0_14 = arith.constant 0 : index
    %c0_15 = arith.constant 0 : index
    %21 = vector.load %arg6[%c0_14, %c0_15] : memref<256x896xf32, #tpu.memory_space<vmem>>, vector<256x128xf32>
    %cst_16 = arith.constant dense<0.000000e+00> : vector<16x128xf32>
    %22 = tpu.matmul %20, %21, %cst_16 {dimension_numbers = #tpu.dot_dimension_numbers<[1], [0], [0], [1], [0, 0, 1, 1], [], []>} : vector<16x256xf32>, vector<256x128xf32>, vector<16x128xf32> -> vector<16x128xf32>
    %c0_17 = arith.constant 0 : index
    %c0_18 = arith.constant 0 : index
    %23 = vector.load %arg7[%c0_17, %c0_18] : memref<1x896xf32, #tpu.memory_space<vmem>>, vector<1x128xf32>
    %24 = vector.broadcast %23 : vector<1x128xf32> to vector<16x128xf32>
    %25 = arith.addf %22, %24 : vector<16x128xf32>
    %26 = math.tanh %25 : vector<16x128xf32>
    %c0_19 = arith.constant 0 : index
    %c0_20 = arith.constant 0 : index
    %27 = vector.load %arg8[%c0_19, %c0_20] : memref<16x896xf32, #tpu.memory_space<vmem>>, vector<16x128xf32>
    tpu.vector_store %arg8[%c0_19, %c0_20], %26 {strides = array<i32>} : memref<16x896xf32, #tpu.memory_space<vmem>>, vector<16x128xf32>,
    %c0_21 = arith.constant 0 : index
    %c128 = arith.constant 128 : index
    %28 = vector.load %arg6[%c0_21, %c128] : memref<256x896xf32, #tpu.memory_space<vmem>>, vector<256x128xf32>
    %cst_22 = arith.constant dense<0.000000e+00> : vector<16x128xf32>
    %29 = tpu.matmul %20, %28, %cst_22 {dimension_numbers = #tpu.dot_dimension_numbers<[1], [0], [0], [1], [0, 0, 1, 1], [], []>} : vector<16x256xf32>, vector<256x128xf32>, vector<16x128xf32> -> vector<16x128xf32>
    %c0_23 = arith.constant 0 : index
    %c128_24 = arith.constant 128 : index
    %30 = vector.load %arg7[%c0_23, %c128_24] : memref<1x896xf32, #tpu.memory_space<vmem>>, vector<1x128xf32>
    %31 = vector.broadcast %30 : vector<1x128xf32> to vector<16x128xf32>
    %32 = arith.addf %29, %31 : vector<16x128xf32>
    %33 = math.tanh %32 : vector<16x128xf32>
    %c0_25 = arith.constant 0 : index
    %c128_26 = arith.constant 128 : index
    %34 = vector.load %arg8[%c0_25, %c128_26] : memref<16x896xf32, #tpu.memory_space<vmem>>, vector<16x128xf32>
    tpu.vector_store %arg8[%c0_25, %c128_26], %33 {strides = array<i32>} : memref<16x896xf32, #tpu.memory_space<vmem>>, vector<16x128xf32>,
    %c0_27 = arith.constant 0 : index
    %c256 = arith.constant 256 : index
    %35 = vector.load %arg6[%c0_27, %c256] : memref<256x896xf32, #tpu.memory_space<vmem>>, vector<256x128xf32>
    %cst_28 = arith.constant dense<0.000000e+00> : vector<16x128xf32>
    %36 = tpu.matmul %20, %35, %cst_28 {dimension_numbers = #tpu.dot_dimension_numbers<[1], [0], [0], [1], [0, 0, 1, 1], [], []>} : vector<16x256xf32>, vector<256x128xf32>, vector<16x128xf32> -> vector<16x128xf32>
    %c0_29 = arith.constant 0 : index
    %c256_30 = arith.constant 256 : index
    %37 = vector.load %arg7[%c0_29, %c256_30] : memref<1x896xf32, #tpu.memory_space<vmem>>, vector<1x128xf32>
    %38 = vector.broadcast %37 : vector<1x128xf32> to vector<16x128xf32>
    %39 = arith.addf %36, %38 : vector<16x128xf32>
    %40 = math.tanh %39 : vector<16x128xf32>
    %c0_31 = arith.constant 0 : index
    %c256_32 = arith.constant 256 : index
    %41 = vector.load %arg8[%c0_31, %c256_32] : memref<16x896xf32, #tpu.memory_space<vmem>>, vector<16x128xf32>
    tpu.vector_store %arg8[%c0_31, %c256_32], %40 {strides = array<i32>} : memref<16x896xf32, #tpu.memory_space<vmem>>, vector<16x128xf32>,
    %c0_33 = arith.constant 0 : index
    %c384 = arith.constant 384 : index
    %42 = vector.load %arg6[%c0_33, %c384] : memref<256x896xf32, #tpu.memory_space<vmem>>, vector<256x128xf32>
    %cst_34 = arith.constant dense<0.000000e+00> : vector<16x128xf32>
    %43 = tpu.matmul %20, %42, %cst_34 {dimension_numbers = #tpu.dot_dimension_numbers<[1], [0], [0], [1], [0, 0, 1, 1], [], []>} : vector<16x256xf32>, vector<256x128xf32>, vector<16x128xf32> -> vector<16x128xf32>
    %c0_35 = arith.constant 0 : index
    %c384_36 = arith.constant 384 : index
    %44 = vector.load %arg7[%c0_35, %c384_36] : memref<1x896xf32, #tpu.memory_space<vmem>>, vector<1x128xf32>
    %45 = vector.broadcast %44 : vector<1x128xf32> to vector<16x128xf32>
    %46 = arith.addf %43, %45 : vector<16x128xf32>
    %47 = math.tanh %46 : vector<16x128xf32>
    %c0_37 = arith.constant 0 : index
    %c384_38 = arith.constant 384 : index
    %48 = vector.load %arg8[%c0_37, %c384_38] : memref<16x896xf32, #tpu.memory_space<vmem>>, vector<16x128xf32>
    tpu.vector_store %arg8[%c0_37, %c384_38], %47 {strides = array<i32>} : memref<16x896xf32, #tpu.memory_space<vmem>>, vector<16x128xf32>,
    %c0_39 = arith.constant 0 : index
    %c512 = arith.constant 512 : index
    %49 = vector.load %arg6[%c0_39, %c512] : memref<256x896xf32, #tpu.memory_space<vmem>>, vector<256x128xf32>
    %cst_40 = arith.constant dense<0.000000e+00> : vector<16x128xf32>
    %50 = tpu.matmul %20, %49, %cst_40 {dimension_numbers = #tpu.dot_dimension_numbers<[1], [0], [0], [1], [0, 0, 1, 1], [], []>} : vector<16x256xf32>, vector<256x128xf32>, vector<16x128xf32> -> vector<16x128xf32>
    %c0_41 = arith.constant 0 : index
    %c512_42 = arith.constant 512 : index
    %51 = vector.load %arg7[%c0_41, %c512_42] : memref<1x896xf32, #tpu.memory_space<vmem>>, vector<1x128xf32>
    %52 = vector.broadcast %51 : vector<1x128xf32> to vector<16x128xf32>
    %53 = arith.addf %50, %52 : vector<16x128xf32>
    %54 = math.tanh %53 : vector<16x128xf32>
    %c0_43 = arith.constant 0 : index
    %c512_44 = arith.constant 512 : index
    %55 = vector.load %arg8[%c0_43, %c512_44] : memref<16x896xf32, #tpu.memory_space<vmem>>, vector<16x128xf32>
    tpu.vector_store %arg8[%c0_43, %c512_44], %54 {strides = array<i32>} : memref<16x896xf32, #tpu.memory_space<vmem>>, vector<16x128xf32>,
    %c0_45 = arith.constant 0 : index
    %c640 = arith.constant 640 : index
    %56 = vector.load %arg6[%c0_45, %c640] : memref<256x896xf32, #tpu.memory_space<vmem>>, vector<256x128xf32>
    %cst_46 = arith.constant dense<0.000000e+00> : vector<16x128xf32>
    %57 = tpu.matmul %20, %56, %cst_46 {dimension_numbers = #tpu.dot_dimension_numbers<[1], [0], [0], [1], [0, 0, 1, 1], [], []>} : vector<16x256xf32>, vector<256x128xf32>, vector<16x128xf32> -> vector<16x128xf32>
    %c0_47 = arith.constant 0 : index
    %c640_48 = arith.constant 640 : index
    %58 = vector.load %arg7[%c0_47, %c640_48] : memref<1x896xf32, #tpu.memory_space<vmem>>, vector<1x128xf32>
    %59 = vector.broadcast %58 : vector<1x128xf32> to vector<16x128xf32>
    %60 = arith.addf %57, %59 : vector<16x128xf32>
    %61 = math.tanh %60 : vector<16x128xf32>
    %c0_49 = arith.constant 0 : index
    %c640_50 = arith.constant 640 : index
    %62 = vector.load %arg8[%c0_49, %c640_50] : memref<16x896xf32, #tpu.memory_space<vmem>>, vector<16x128xf32>
    tpu.vector_store %arg8[%c0_49, %c640_50], %61 {strides = array<i32>} : memref<16x896xf32, #tpu.memory_space<vmem>>, vector<16x128xf32>,
    %c0_51 = arith.constant 0 : index
    %c768 = arith.constant 768 : index
    %63 = vector.load %arg6[%c0_51, %c768] : memref<256x896xf32, #tpu.memory_space<vmem>>, vector<256x128xf32>
    %cst_52 = arith.constant dense<0.000000e+00> : vector<16x128xf32>
    %64 = tpu.matmul %20, %63, %cst_52 {dimension_numbers = #tpu.dot_dimension_numbers<[1], [0], [0], [1], [0, 0, 1, 1], [], []>} : vector<16x256xf32>, vector<256x128xf32>, vector<16x128xf32> -> vector<16x128xf32>
    %c0_53 = arith.constant 0 : index
    %c768_54 = arith.constant 768 : index
    %65 = vector.load %arg7[%c0_53, %c768_54] : memref<1x896xf32, #tpu.memory_space<vmem>>, vector<1x128xf32>
    %66 = vector.broadcast %65 : vector<1x128xf32> to vector<16x128xf32>
    %67 = arith.addf %64, %66 : vector<16x128xf32>
    %68 = math.tanh %67 : vector<16x128xf32>
    %c0_55 = arith.constant 0 : index
    %c768_56 = arith.constant 768 : index
    %69 = vector.load %arg8[%c0_55, %c768_56] : memref<16x896xf32, #tpu.memory_space<vmem>>, vector<16x128xf32>
    tpu.vector_store %arg8[%c0_55, %c768_56], %68 {strides = array<i32>} : memref<16x896xf32, #tpu.memory_space<vmem>>, vector<16x128xf32>,
    return
  }
  func.func @transform_0(%arg0: i32) -> (i32, i32) {
    %c0_i32 = arith.constant 0 : i32
    %c0_i32_0 = arith.constant 0 : i32
    return %arg0, %c0_i32 : i32, i32
  }
  func.func @transform_1(%arg0: i32) -> (i32, i32) {
    %c0_i32 = arith.constant 0 : i32
    %c0_i32_0 = arith.constant 0 : i32
    %c0_i32_1 = arith.constant 0 : i32
    return %c0_i32, %c0_i32_0 : i32, i32
  }
  func.func @transform_2(%arg0: i32) -> (i32, i32) {
    %c0_i32 = arith.constant 0 : i32
    %c0_i32_0 = arith.constant 0 : i32
    %c0_i32_1 = arith.constant 0 : i32
    return %c0_i32, %c0_i32_0 : i32, i32
  }
  func.func @transform_3(%arg0: i32) -> (i32, i32) {
    %c0_i32 = arith.constant 0 : i32
    %c0_i32_0 = arith.constant 0 : i32
    %c0_i32_1 = arith.constant 0 : i32
    return %c0_i32, %c0_i32_0 : i32, i32
  }
  func.func @transform_4(%arg0: i32) -> (i32, i32) {
    %c0_i32 = arith.constant 0 : i32
    %c0_i32_0 = arith.constant 0 : i32
    %c0_i32_1 = arith.constant 0 : i32
    return %c0_i32, %c0_i32_0 : i32, i32
  }
  func.func @transform_5(%arg0: i32) -> (i32, i32) {
    %c0_i32 = arith.constant 0 : i32
    %c0_i32_0 = arith.constant 0 : i32
    %c0_i32_1 = arith.constant 0 : i32
    return %c0_i32, %c0_i32_0 : i32, i32
  }
  func.func @transform_6(%arg0: i32) -> (i32, i32) {
    %c0_i32 = arith.constant 0 : i32
    %c0_i32_0 = arith.constant 0 : i32
    %c0_i32_1 = arith.constant 0 : i32
    return %c0_i32, %c0_i32_0 : i32, i32
  }
  func.func @transform_7(%arg0: i32) -> (i32, i32) {
    %c0_i32 = arith.constant 0 : i32
    %c0_i32_0 = arith.constant 0 : i32
    return %arg0, %c0_i32 : i32, i32
  }
}

</mosaic_0001>

<llo_original>
// kernel: generator_forward.1
$region0: #{generator_forward.1}
  #allocation0 [shape = 'u32[]', space=smem, size = 0x4, offset = 0x4, fixed_abs, tag = 'smem constant byte address 0x4 - core index']
  #allocation1 [shape = 'u32[144,128]{1,0:T(1,128)}', space=vmem, size = 0x12000, scoped, tag = 'internal scratch']
  %s0 = inlined_call_operand.vmem [shape: f32[16,64], index: 0, kind: input, shape index: {}]
  %s1 = inlined_call_operand.vmem [shape: f32[64,128], index: 1, kind: input, shape index: {}]
  %s2 = inlined_call_operand.vmem [shape: f32[1,128], index: 2, kind: input, shape index: {}]
  %s3 = inlined_call_operand.vmem [shape: f32[128,256], index: 3, kind: input, shape index: {}]
  %s4 = inlined_call_operand.vmem [shape: f32[1,256], index: 4, kind: input, shape index: {}]
  %s5 = inlined_call_operand.vmem [shape: f32[256,896], index: 5, kind: input, shape index: {}]
  %s6 = inlined_call_operand.vmem [shape: f32[1,896], index: 6, kind: input, shape index: {}]
  %s7 = inlined_call_operand.hbm [shape: f32[16,896], index: 7, kind: output, shape index: {}]
  %s8 = sld [smem:[#allocation0]]
  $region38: #{generator_forward.1} parent=0
    _
  %s10 = ssub.s32 1, %s8
  %s11 = scalar_select 0, %s10, %s8
  $region1: #{generator_forward.1} parent=0
    #allocation2 [shape = 'u8[57344]{0}', space=vmem, size = 0xe000, scoped, tag = 'output window, operand 0, single buffered']
    #allocation3 [shape = 's32[1]{0}', space=sflag, size = 0x4, scoped, tag = 'scoped memory for generator_forward.1']
    %12 = vsyncpa [#allocation3], 0
    // Predicated region
    $region2: #{generator_forward.1} parent=1 // pred_check
      _
    $region3: #{generator_forward.1} parent=1 // pred_check_branch
      %14 = sbr.rel (0) target = $region5
    $region4: #{generator_forward.1} parent=1 // pred_region
      _
    $region5: #{generator_forward.1} parent=1 // pred_fallthru
      _
    // Predicated region
    $region6: #{generator_forward.1} parent=1 // pred_check
      _
    $region7: #{generator_forward.1} parent=1 // pred_check_branch
      %16 = sbr.rel (0) target = $region9
    $region8: #{generator_forward.1} parent=1 // pred_region
      _
    $region9: #{generator_forward.1} parent=1 // pred_fallthru
      _
    // Predicated region
    $region10: #{generator_forward.1} parent=1 // pred_check
      _
    $region11: #{generator_forward.1} parent=1 // pred_check_branch
      %18 = sbr.rel (0) target = $region13
    $region12: #{generator_forward.1} parent=1 // pred_region
      _
    $region13: #{generator_forward.1} parent=1 // pred_fallthru
      _
    // Predicated region
    $region14: #{generator_forward.1} parent=1 // pred_check
      _
    $region15: #{generator_forward.1} parent=1 // pred_check_branch
      %20 = sbr.rel (0) target = $region17
    $region16: #{generator_forward.1} parent=1 // pred_region
      _
    $region17: #{generator_forward.1} parent=1 // pred_fallthru
      _
    // Predicated region
    $region18: #{generator_forward.1} parent=1 // pred_check
      _
    $region19: #{generator_forward.1} parent=1 // pred_check_branch
      %22 = sbr.rel (0) target = $region21
    $region20: #{generator_forward.1} parent=1 // pred_region
      _
    $region21: #{generator_forward.1} parent=1 // pred_fallthru
      _
    // Predicated region
    $region22: #{generator_forward.1} parent=1 // pred_check
      _
    $region23: #{generator_forward.1} parent=1 // pred_check_branch
      %24 = sbr.rel (0) target = $region25
    $region24: #{generator_forward.1} parent=1 // pred_region
      _
    $region25: #{generator_forward.1} parent=1 // pred_fallthru
      _
    // Predicated region
    $region26: #{generator_forward.1} parent=1 // pred_check
      _
    $region27: #{generator_forward.1} parent=1 // pred_check_branch
      %26 = sbr.rel (0) target = $region29
    $region28: #{generator_forward.1} parent=1 // pred_region
      _
    $region29: #{generator_forward.1} parent=1 // pred_fallthru
      _
    %v27 = vld [vmem:[%s0] sm:$0xff]
    %v28 = vld [vmem:[%s0 + $0x8] sm:$0xff]
    %v29 = vld [vmem:[%s1] sm:$0xff]
    %v30 = vld [vmem:[%s1 + $0x8] sm:$0xff]
    %v31 = vld [vmem:[%s1 + $0x10] sm:$0xff]
    %v32 = vld [vmem:[%s1 + $0x18] sm:$0xff]
    %v33 = vld [vmem:[%s1 + $0x20] sm:$0xff]
    %v34 = vld [vmem:[%s1 + $0x28] sm:$0xff]
    %v35 = vld [vmem:[%s1 + $0x30] sm:$0xff]
    %v36 = vld [vmem:[%s1 + $0x38] sm:$0xff]
    %v37 = vld [vmem:[%s2] sm:$0x1]
    %v39 = vlaneseq
    %v40 = vshrl.u32 %v39, 7
    %v41 = vsub.s32 0, %v40
    %v42 = vrot.slane %v37, %v41
    %vm44 = vcmask 523264
    %v46 = vsel %vm44, %v27, 0
    %v49 = vsel %vm44, %v28, 0
    %51 = vmatprep.subr.mxu0 0.0
    %52 = vmatpush1.msra.mxu0 %v29
    %53 = vmatprep.subr.mxu0 0.0
    %54 = vmatpush1.msra.mxu0 %v30
    %55 = vmatprep.subr.mxu0 0.0
    %56 = vmatpush1.msra.mxu0 %v31
    %57 = vmatprep.subr.mxu0 0.0
    %58 = vmatpush1.msra.mxu0 %v32
    %59 = vmatprep.subr.mxu0 0.0
    %60 = vmatpush1.msra.mxu0 %v33
    %61 = vmatprep.subr.mxu0 0.0
    %62 = vmatpush1.msra.mxu0 %v34
    %63 = vmatprep.subr.mxu0 0.0
    %64 = vmatpush1.msra.mxu0 %v35
    %65 = vmatprep.subr.mxu0 0.0
    %66 = vmatpush1.msra.mxu0 %v36
    %67 = vmatprep.subr.mxu0 0.0
    %68 = vmatpush1.msra.mxu0 0.0
    %69 = vmatprep.subr.mxu0 0.0
    %70 = vmatpush1.msra.mxu0 0.0
    %71 = vmatprep.subr.mxu0 0.0
    %72 = vmatpush1.msra.mxu0 0.0
    %73 = vmatprep.subr.mxu0 0.0
    %74 = vmatpush1.msra.mxu0 0.0
    %75 = vmatprep.subr.mxu0 0.0
    %76 = vmatpush1.msra.mxu0 0.0
    %77 = vmatprep.subr.mxu0 0.0
    %78 = vmatpush1.msra.mxu0 0.0
    %79 = vmatprep.subr.mxu0 0.0
    %80 = vmatpush1.msra.mxu0 0.0
    %81 = vmatprep.subr.mxu0 0.0
    %82 = vmatpush1.msra.mxu0 0.0
    %83 = vmatprep.subr.mxu0 0.0
    %84 = vmatpush1.msra.mxu0 0.0
    %85 = vmatprep.subr.mxu0 0.0
    %86 = vmatpush1.msra.mxu0 0.0
    %87 = vmatprep.subr.mxu0 0.0
    %88 = vmatpush1.msra.mxu0 0.0
    %89 = vmatprep.subr.mxu0 0.0
    %90 = vmatpush1.msra.mxu0 0.0
    %91 = vmatprep.subr.mxu0 0.0
    %92 = vmatpush1.msra.mxu0 0.0
    %93 = vmatprep.subr.mxu0 0.0
    %94 = vmatpush1.msra.mxu0 0.0
    %95 = vmatprep.subr.mxu0 0.0
    %96 = vmatpush1.msra.mxu0 0.0
    %97 = vmatprep.subr.mxu0 0.0
    %98 = vmatpush1.msra.mxu0 0.0
    %99 = vmatprep.subr.mxu0 0.0
    %100 = vmatpush1.msra.mxu0 0.0
    %101 = vmatprep.subr.mxu0 0.0
    %102 = vmatpush1.msra.mxu0 0.0
    %103 = vmatprep.subr.mxu0 0.0
    %104 = vmatpush1.msra.mxu0 0.0
    %105 = vmatprep.subr.mxu0 0.0
    %106 = vmatpush1.msra.mxu0 0.0
    %107 = vmatprep.subr.mxu0 0.0
    %108 = vmatpush1.msra.mxu0 0.0
    %109 = vmatprep.subr.mxu0 0.0
    %110 = vmatpush1.msra.mxu0 0.0
    %111 = vmatprep.subr.mxu0 0.0
    %112 = vmatpush1.msra.mxu0 0.0
    %113 = vmatprep.subr.mxu0 0.0
    %114 = vmatpush1.msra.mxu0 0.0
    %115 = vmatprep.mubr.f32.mxu0 0.0
    %116 = vmatmul.mubr.f32.gmra.mrb[0].mxu0 %v46
    %v117 = vpop.f32.mrb[0].mxu0
    %v118 = vadd.f32 %v42, %v117
    %v119 = vpop.f32.mrb[0].mxu0
    %120 = vmatprep.mubr.f32.mxu0 0.0
    %121 = vmatmul.mubr.f32.gmra.mrb[0].mxu0 %v49
    %v122 = vpop.f32.mrb[0].mxu0
    %v123 = vadd.f32 %v42, %v122
    %v124 = vpop.f32.mrb[0].mxu0
    %125 = vdwg.mxu0
    %vm126 = vcmp.gt.f32.partialorder %v118, 0.0
    %vm127 = vcmp.gt.f32.partialorder %v123, 0.0
    %v128 = vmul.f32 %v118, 0.01
    %v129 = vmul.f32 %v123, 0.01
    %v130 = vsel %vm126, %v118, %v128
    %v131 = vsel %vm127, %v123, %v129
    %v132 = vld [vmem:[%s3] sm:$0xff]
    %v133 = vld [vmem:[%s3 + $0x8] sm:$0xff]
    %v134 = vld [vmem:[%s3 + $0x10] sm:$0xff]
    %v135 = vld [vmem:[%s3 + $0x18] sm:$0xff]
    %v136 = vld [vmem:[%s3 + $0x20] sm:$0xff]
    %v137 = vld [vmem:[%s3 + $0x28] sm:$0xff]
    %v138 = vld [vmem:[%s3 + $0x30] sm:$0xff]
    %v139 = vld [vmem:[%s3 + $0x38] sm:$0xff]
    %v140 = vld [vmem:[%s3 + $0x40] sm:$0xff]
    %v141 = vld [vmem:[%s3 + $0x48] sm:$0xff]
    %v142 = vld [vmem:[%s3 + $0x50] sm:$0xff]
    %v143 = vld [vmem:[%s3 + $0x58] sm:$0xff]
    %v144 = vld [vmem:[%s3 + $0x60] sm:$0xff]
    %v145 = vld [vmem:[%s3 + $0x68] sm:$0xff]
    %v146 = vld [vmem:[%s3 + $0x70] sm:$0xff]
    %v147 = vld [vmem:[%s3 + $0x78] sm:$0xff]
    %v148 = vld [vmem:[%s3 + $0x80] sm:$0xff]
    %v149 = vld [vmem:[%s3 + $0x88] sm:$0xff]
    %v150 = vld [vmem:[%s3 + $0x90] sm:$0xff]
    %v151 = vld [vmem:[%s3 + $0x98] sm:$0xff]
    %v152 = vld [vmem:[%s3 + $0xa0] sm:$0xff]
    %v153 = vld [vmem:[%s3 + $0xa8] sm:$0xff]
    %v154 = vld [vmem:[%s3 + $0xb0] sm:$0xff]
    %v155 = vld [vmem:[%s3 + $0xb8] sm:$0xff]
    %v156 = vld [vmem:[%s3 + $0xc0] sm:$0xff]
    %v157 = vld [vmem:[%s3 + $0xc8] sm:$0xff]
    %v158 = vld [vmem:[%s3 + $0xd0] sm:$0xff]
    %v159 = vld [vmem:[%s3 + $0xd8] sm:$0xff]
    %v160 = vld [vmem:[%s3 + $0xe0] sm:$0xff]
    %v161 = vld [vmem:[%s3 + $0xe8] sm:$0xff]
    %v162 = vld [vmem:[%s3 + $0xf0] sm:$0xff]
    %v163 = vld [vmem:[%s3 + $0xf8] sm:$0xff]
    %v164 = vld [vmem:[%s4] sm:$0x3]
    %v166 = vlaneseq
    %v167 = vshrl.u32 %v166, 7
    %v168 = vsub.s32 0, %v167
    %v169 = vrot.slane %v164, %v168
    %v170 = vlaneseq
    %v171 = vshrl.u32 %v170, 7
    %v172 = vsub.s32 1, %v171
    %v173 = vrot.slane %v164, %v172
    %176 = vmatprep.subr.mxu0 %v133
    %177 = vmatpush1.msra.mxu0 %v132
    %178 = vmatprep.subr.mxu0 %v135
    %179 = vmatpush1.msra.mxu0 %v134
    %180 = vmatprep.subr.mxu0 %v137
    %181 = vmatpush1.msra.mxu0 %v136
    %182 = vmatprep.subr.mxu0 %v139
    %183 = vmatpush1.msra.mxu0 %v138
    %184 = vmatprep.subr.mxu0 %v141
    %185 = vmatpush1.msra.mxu0 %v140
    %186 = vmatprep.subr.mxu0 %v143
    %187 = vmatpush1.msra.mxu0 %v142
    %188 = vmatprep.subr.mxu0 %v145
    %189 = vmatpush1.msra.mxu0 %v144
    %190 = vmatprep.subr.mxu0 %v147
    %191 = vmatpush1.msra.mxu0 %v146
    %192 = vmatprep.subr.mxu0 %v149
    %193 = vmatpush1.msra.mxu0 %v148
    %194 = vmatprep.subr.mxu0 %v151
    %195 = vmatpush1.msra.mxu0 %v150
    %196 = vmatprep.subr.mxu0 %v153
    %197 = vmatpush1.msra.mxu0 %v152
    %198 = vmatprep.subr.mxu0 %v155
    %199 = vmatpush1.msra.mxu0 %v154
    %200 = vmatprep.subr.mxu0 %v157
    %201 = vmatpush1.msra.mxu0 %v156
    %202 = vmatprep.subr.mxu0 %v159
    %203 = vmatpush1.msra.mxu0 %v158
    %204 = vmatprep.subr.mxu0 %v161
    %205 = vmatpush1.msra.mxu0 %v160
    %206 = vmatprep.subr.mxu0 %v163
    %207 = vmatpush1.msra.mxu0 %v162
    %208 = vmatprep.subr.mxu0 0.0
    %209 = vmatpush1.msra.mxu0 0.0
    %210 = vmatprep.subr.mxu0 0.0
    %211 = vmatpush1.msra.mxu0 0.0
    %212 = vmatprep.subr.mxu0 0.0
    %213 = vmatpush1.msra.mxu0 0.0
    %214 = vmatprep.subr.mxu0 0.0
    %215 = vmatpush1.msra.mxu0 0.0
    %216 = vmatprep.subr.mxu0 0.0
    %217 = vmatpush1.msra.mxu0 0.0
    %218 = vmatprep.subr.mxu0 0.0
    %219 = vmatpush1.msra.mxu0 0.0
    %220 = vmatprep.subr.mxu0 0.0
    %221 = vmatpush1.msra.mxu0 0.0
    %222 = vmatprep.subr.mxu0 0.0
    %223 = vmatpush1.msra.mxu0 0.0
    %224 = vmatprep.subr.mxu0 0.0
    %225 = vmatpush1.msra.mxu0 0.0
    %226 = vmatprep.subr.mxu0 0.0
    %227 = vmatpush1.msra.mxu0 0.0
    %228 = vmatprep.subr.mxu0 0.0
    %229 = vmatpush1.msra.mxu0 0.0
    %230 = vmatprep.subr.mxu0 0.0
    %231 = vmatpush1.msra.mxu0 0.0
    %232 = vmatprep.subr.mxu0 0.0
    %233 = vmatpush1.msra.mxu0 0.0
    %234 = vmatprep.subr.mxu0 0.0
    %235 = vmatpush1.msra.mxu0 0.0
    %236 = vmatprep.subr.mxu0 0.0
    %237 = vmatpush1.msra.mxu0 0.0
    %238 = vmatprep.subr.mxu0 0.0
    %239 = vmatpush1.msra.mxu0 0.0
    %240 = vmatprep.mubr.f32.mxu0 0.0
    %241 = vmatmul.mubr.f32.gmra.mrb[0].mxu0 %v130
    %v242 = vpop.f32.mrb[0].mxu0
    %v243 = vadd.f32 %v169, %v242
    %v244 = vpop.f32.mrb[0].mxu0
    %v245 = vadd.f32 %v173, %v244
    %246 = vmatprep.mubr.f32.mxu0 0.0
    %247 = vmatmul.mubr.f32.gmra.mrb[0].mxu0 %v131
    %v248 = vpop.f32.mrb[0].mxu0
    %v249 = vadd.f32 %v169, %v248
    %v250 = vpop.f32.mrb[0].mxu0
    %v251 = vadd.f32 %v173, %v250
    %252 = vdwg.mxu0
    %vm253 = vcmp.gt.f32.partialorder %v243, 0.0
    %vm254 = vcmp.gt.f32.partialorder %v245, 0.0
    %vm255 = vcmp.gt.f32.partialorder %v249, 0.0
    %vm256 = vcmp.gt.f32.partialorder %v251, 0.0
    %v257 = vmul.f32 %v243, 0.01
    %v258 = vmul.f32 %v245, 0.01
    %v259 = vmul.f32 %v249, 0.01
    %v260 = vmul.f32 %v251, 0.01
    %v261 = vsel %vm253, %v243, %v257
    %v262 = vsel %vm254, %v245, %v258
    %v263 = vsel %vm255, %v249, %v259
    %v264 = vsel %vm256, %v251, %v260
    %v265 = vld [vmem:[%s5] sm:$0xff]
    %v266 = vld [vmem:[%s5 + $0x38] sm:$0xff]
    %v267 = vld [vmem:[%s5 + $0x70] sm:$0xff]
    %v268 = vld [vmem:[%s5 + $0xa8] sm:$0xff]
    %v269 = vld [vmem:[%s5 + $0xe0] sm:$0xff]
    %v270 = vld [vmem:[%s5 + $0x118] sm:$0xff]
    %v271 = vld [vmem:[%s5 + $0x150] sm:$0xff]
    %v272 = vld [vmem:[%s5 + $0x188] sm:$0xff]
    %v273 = vld [vmem:[%s5 + $0x1c0] sm:$0xff]
    %v274 = vld [vmem:[%s5 + $0x1f8] sm:$0xff]
    %v275 = vld [vmem:[%s5 + $0x230] sm:$0xff]
    %v276 = vld [vmem:[%s5 + $0x268] sm:$0xff]
    %v277 = vld [vmem:[%s5 + $0x2a0] sm:$0xff]
    %v278 = vld [vmem:[%s5 + $0x2d8] sm:$0xff]
    %v279 = vld [vmem:[%s5 + $0x310] sm:$0xff]
    %v280 = vld [vmem:[%s5 + $0x348] sm:$0xff]
    %v281 = vld [vmem:[%s5 + $0x380] sm:$0xff]
    %v282 = vld [vmem:[%s5 + $0x3b8] sm:$0xff]
    %v283 = vld [vmem:[%s5 + $0x3f0] sm:$0xff]
    %v284 = vld [vmem:[%s5 + $0x428] sm:$0xff]
    %v285 = vld [vmem:[%s5 + $0x460] sm:$0xff]
    %v286 = vld [vmem:[%s5 + $0x498] sm:$0xff]
    %v287 = vld [vmem:[%s5 + $0x4d0] sm:$0xff]
    %v288 = vld [vmem:[%s5 + $0x508] sm:$0xff]
    %v289 = vld [vmem:[%s5 + $0x540] sm:$0xff]
    %v290 = vld [vmem:[%s5 + $0x578] sm:$0xff]
    %v291 = vld [vmem:[%s5 + $0x5b0] sm:$0xff]
    %v292 = vld [vmem:[%s5 + $0x5e8] sm:$0xff]
    %v293 = vld [vmem:[%s5 + $0x620] sm:$0xff]
    %v294 = vld [vmem:[%s5 + $0x658] sm:$0xff]
    %v295 = vld [vmem:[%s5 + $0x690] sm:$0xff]
    %v296 = vld [vmem:[%s5 + $0x6c8] sm:$0xff]
    %v297 = vld [vmem:[%s6] sm:$0x1]
    %v299 = vlaneseq
    %v300 = vshrl.u32 %v299, 7
    %v301 = vsub.s32 0, %v300
    %v302 = vrot.slane %v297, %v301
    %304 = vmatprep.subr.mxu0 0.0
    %305 = vmatpush1.msra.mxu0 %v265
    %306 = vmatprep.subr.mxu0 0.0
    %307 = vmatpush1.msra.mxu0 %v266
    %308 = vmatprep.subr.mxu0 0.0
    %309 = vmatpush1.msra.mxu0 %v267
    %310 = vmatprep.subr.mxu0 0.0
    %311 = vmatpush1.msra.mxu0 %v268
    %312 = vmatprep.subr.mxu0 0.0
    %313 = vmatpush1.msra.mxu0 %v269
    %314 = vmatprep.subr.mxu0 0.0
    %315 = vmatpush1.msra.mxu0 %v270
    %316 = vmatprep.subr.mxu0 0.0
    %317 = vmatpush1.msra.mxu0 %v271
    %318 = vmatprep.subr.mxu0 0.0
    %319 = vmatpush1.msra.mxu0 %v272
    %320 = vmatprep.subr.mxu0 0.0
    %321 = vmatpush1.msra.mxu0 %v273
    %322 = vmatprep.subr.mxu0 0.0
    %323 = vmatpush1.msra.mxu0 %v274
    %324 = vmatprep.subr.mxu0 0.0
    %325 = vmatpush1.msra.mxu0 %v275
    %326 = vmatprep.subr.mxu0 0.0
    %327 = vmatpush1.msra.mxu0 %v276
    %328 = vmatprep.subr.mxu0 0.0
    %329 = vmatpush1.msra.mxu0 %v277
    %330 = vmatprep.subr.mxu0 0.0
    %331 = vmatpush1.msra.mxu0 %v278
    %332 = vmatprep.subr.mxu0 0.0
    %333 = vmatpush1.msra.mxu0 %v279
    %334 = vmatprep.subr.mxu0 0.0
    %335 = vmatpush1.msra.mxu0 %v280
    %336 = vmatprep.subr.mxu0 0.0
    %337 = vmatpush1.msra.mxu0 %v281
    %338 = vmatprep.subr.mxu0 0.0
    %339 = vmatpush1.msra.mxu0 %v282
    %340 = vmatprep.subr.mxu0 0.0
    %341 = vmatpush1.msra.mxu0 %v283
    %342 = vmatprep.subr.mxu0 0.0
    %343 = vmatpush1.msra.mxu0 %v284
    %344 = vmatprep.subr.mxu0 0.0
    %345 = vmatpush1.msra.mxu0 %v285
    %346 = vmatprep.subr.mxu0 0.0
    %347 = vmatpush1.msra.mxu0 %v286
    %348 = vmatprep.subr.mxu0 0.0
    %349 = vmatpush1.msra.mxu0 %v287
    %350 = vmatprep.subr.mxu0 0.0
    %351 = vmatpush1.msra.mxu0 %v288
    %352 = vmatprep.subr.mxu0 0.0
    %353 = vmatpush1.msra.mxu0 %v289
    %354 = vmatprep.subr.mxu0 0.0
    %355 = vmatpush1.msra.mxu0 %v290
    %356 = vmatprep.subr.mxu0 0.0
    %357 = vmatpush1.msra.mxu0 %v291
    %358 = vmatprep.subr.mxu0 0.0
    %359 = vmatpush1.msra.mxu0 %v292
    %360 = vmatprep.subr.mxu0 0.0
    %361 = vmatpush1.msra.mxu0 %v293
    %362 = vmatprep.subr.mxu0 0.0
    %363 = vmatpush1.msra.mxu0 %v294
    %364 = vmatprep.subr.mxu0 0.0
    %365 = vmatpush1.msra.mxu0 %v295
    %366 = vmatprep.subr.mxu0 0.0
    %367 = vmatpush1.msra.mxu0 %v296
    %368 = vmatprep.mubr.f32.mxu0 %v262
    %369 = vmatmul.mubr.f32.gmra.mrb[0].mxu0 %v261
    %v370 = vpop.f32.mrb[0].mxu0
    %v371 = vadd.f32 %v302, %v370
    %v372 = vpop.f32.mrb[0].mxu0
    %373 = vmatprep.mubr.f32.mxu0 %v264
    %374 = vmatmul.mubr.f32.gmra.mrb[0].mxu0 %v263
    %v375 = vpop.f32.mrb[0].mxu0
    %v376 = vadd.f32 %v302, %v375
    %v377 = vpop.f32.mrb[0].mxu0
    %378 = vdwg.mxu0
    %v379 = vtanh.pop %v371
    %v380 = vtanh.pop %v376
    %381 = vst [vmem:[#allocation2] sm:$0xff] %v379
    %382 = vst [vmem:[#allocation2 + $0x38] sm:$0xff] %v380
    %v383 = vld [vmem:[%s5 + $0x8] sm:$0xff]
    %v384 = vld [vmem:[%s5 + $0x40] sm:$0xff]
    %v385 = vld [vmem:[%s5 + $0x78] sm:$0xff]
    %v386 = vld [vmem:[%s5 + $0xb0] sm:$0xff]
    %v387 = vld [vmem:[%s5 + $0xe8] sm:$0xff]
    %v388 = vld [vmem:[%s5 + $0x120] sm:$0xff]
    %v389 = vld [vmem:[%s5 + $0x158] sm:$0xff]
    %v390 = vld [vmem:[%s5 + $0x190] sm:$0xff]
    %v391 = vld [vmem:[%s5 + $0x1c8] sm:$0xff]
    %v392 = vld [vmem:[%s5 + $0x200] sm:$0xff]
    %v393 = vld [vmem:[%s5 + $0x238] sm:$0xff]
    %v394 = vld [vmem:[%s5 + $0x270] sm:$0xff]
    %v395 = vld [vmem:[%s5 + $0x2a8] sm:$0xff]
    %v396 = vld [vmem:[%s5 + $0x2e0] sm:$0xff]
    %v397 = vld [vmem:[%s5 + $0x318] sm:$0xff]
    %v398 = vld [vmem:[%s5 + $0x350] sm:$0xff]
    %v399 = vld [vmem:[%s5 + $0x388] sm:$0xff]
    %v400 = vld [vmem:[%s5 + $0x3c0] sm:$0xff]
    %v401 = vld [vmem:[%s5 + $0x3f8] sm:$0xff]
    %v402 = vld [vmem:[%s5 + $0x430] sm:$0xff]
    %v403 = vld [vmem:[%s5 + $0x468] sm:$0xff]
    %v404 = vld [vmem:[%s5 + $0x4a0] sm:$0xff]
    %v405 = vld [vmem:[%s5 + $0x4d8] sm:$0xff]
    %v406 = vld [vmem:[%s5 + $0x510] sm:$0xff]
    %v407 = vld [vmem:[%s5 + $0x548] sm:$0xff]
    %v408 = vld [vmem:[%s5 + $0x580] sm:$0xff]
    %v409 = vld [vmem:[%s5 + $0x5b8] sm:$0xff]
    %v410 = vld [vmem:[%s5 + $0x5f0] sm:$0xff]
    %v411 = vld [vmem:[%s5 + $0x628] sm:$0xff]
    %v412 = vld [vmem:[%s5 + $0x660] sm:$0xff]
    %v413 = vld [vmem:[%s5 + $0x698] sm:$0xff]
    %v414 = vld [vmem:[%s5 + $0x6d0] sm:$0xff]
    %v415 = vld [vmem:[%s6 + $0x1] sm:$0x1]
    %v417 = vlaneseq
    %v418 = vshrl.u32 %v417, 7
    %v419 = vsub.s32 0, %v418
    %v420 = vrot.slane %v415, %v419
    %422 = vmatprep.subr.mxu0 0.0
    %423 = vmatpush1.msra.mxu0 %v383
    %424 = vmatprep.subr.mxu0 0.0
    %425 = vmatpush1.msra.mxu0 %v384
    %426 = vmatprep.subr.mxu0 0.0
    %427 = vmatpush1.msra.mxu0 %v385
    %428 = vmatprep.subr.mxu0 0.0
    %429 = vmatpush1.msra.mxu0 %v386
    %430 = vmatprep.subr.mxu0 0.0
    %431 = vmatpush1.msra.mxu0 %v387
    %432 = vmatprep.subr.mxu0 0.0
    %433 = vmatpush1.msra.mxu0 %v388
    %434 = vmatprep.subr.mxu0 0.0
    %435 = vmatpush1.msra.mxu0 %v389
    %436 = vmatprep.subr.mxu0 0.0
    %437 = vmatpush1.msra.mxu0 %v390
    %438 = vmatprep.subr.mxu0 0.0
    %439 = vmatpush1.msra.mxu0 %v391
    %440 = vmatprep.subr.mxu0 0.0
    %441 = vmatpush1.msra.mxu0 %v392
    %442 = vmatprep.subr.mxu0 0.0
    %443 = vmatpush1.msra.mxu0 %v393
    %444 = vmatprep.subr.mxu0 0.0
    %445 = vmatpush1.msra.mxu0 %v394
    %446 = vmatprep.subr.mxu0 0.0
    %447 = vmatpush1.msra.mxu0 %v395
    %448 = vmatprep.subr.mxu0 0.0
    %449 = vmatpush1.msra.mxu0 %v396
    %450 = vmatprep.subr.mxu0 0.0
    %451 = vmatpush1.msra.mxu0 %v397
    %452 = vmatprep.subr.mxu0 0.0
    %453 = vmatpush1.msra.mxu0 %v398
    %454 = vmatprep.subr.mxu0 0.0
    %455 = vmatpush1.msra.mxu0 %v399
    %456 = vmatprep.subr.mxu0 0.0
    %457 = vmatpush1.msra.mxu0 %v400
    %458 = vmatprep.subr.mxu0 0.0
    %459 = vmatpush1.msra.mxu0 %v401
    %460 = vmatprep.subr.mxu0 0.0
    %461 = vmatpush1.msra.mxu0 %v402
    %462 = vmatprep.subr.mxu0 0.0
    %463 = vmatpush1.msra.mxu0 %v403
    %464 = vmatprep.subr.mxu0 0.0
    %465 = vmatpush1.msra.mxu0 %v404
    %466 = vmatprep.subr.mxu0 0.0
    %467 = vmatpush1.msra.mxu0 %v405
    %468 = vmatprep.subr.mxu0 0.0
    %469 = vmatpush1.msra.mxu0 %v406
    %470 = vmatprep.subr.mxu0 0.0
    %471 = vmatpush1.msra.mxu0 %v407
    %472 = vmatprep.subr.mxu0 0.0
    %473 = vmatpush1.msra.mxu0 %v408
    %474 = vmatprep.subr.mxu0 0.0
    %475 = vmatpush1.msra.mxu0 %v409
    %476 = vmatprep.subr.mxu0 0.0
    %477 = vmatpush1.msra.mxu0 %v410
    %478 = vmatprep.subr.mxu0 0.0
    %479 = vmatpush1.msra.mxu0 %v411
    %480 = vmatprep.subr.mxu0 0.0
    %481 = vmatpush1.msra.mxu0 %v412
    %482 = vmatprep.subr.mxu0 0.0
    %483 = vmatpush1.msra.mxu0 %v413
    %484 = vmatprep.subr.mxu0 0.0
    %485 = vmatpush1.msra.mxu0 %v414
    %486 = vmatprep.mubr.f32.mxu0 %v262
    %487 = vmatmul.mubr.f32.gmra.mrb[0].mxu0 %v261
    %v488 = vpop.f32.mrb[0].mxu0
    %v489 = vadd.f32 %v420, %v488
    %v490 = vpop.f32.mrb[0].mxu0
    %491 = vmatprep.mubr.f32.mxu0 %v264
    %492 = vmatmul.mubr.f32.gmra.mrb[0].mxu0 %v263
    %v493 = vpop.f32.mrb[0].mxu0
    %v494 = vadd.f32 %v420, %v493
    %v495 = vpop.f32.mrb[0].mxu0
    %496 = vdwg.mxu0
    %v497 = vtanh.pop %v489
    %v498 = vtanh.pop %v494
    %499 = vst [vmem:[#allocation2 + $0x8] sm:$0xff] %v497
    %500 = vst [vmem:[#allocation2 + $0x40] sm:$0xff] %v498
    %v501 = vld [vmem:[%s5 + $0x10] sm:$0xff]
    %v502 = vld [vmem:[%s5 + $0x48] sm:$0xff]
    %v503 = vld [vmem:[%s5 + $0x80] sm:$0xff]
    %v504 = vld [vmem:[%s5 + $0xb8] sm:$0xff]
    %v505 = vld [vmem:[%s5 + $0xf0] sm:$0xff]
    %v506 = vld [vmem:[%s5 + $0x128] sm:$0xff]
    %v507 = vld [vmem:[%s5 + $0x160] sm:$0xff]
    %v508 = vld [vmem:[%s5 + $0x198] sm:$0xff]
    %v509 = vld [vmem:[%s5 + $0x1d0] sm:$0xff]
    %v510 = vld [vmem:[%s5 + $0x208] sm:$0xff]
    %v511 = vld [vmem:[%s5 + $0x240] sm:$0xff]
    %v512 = vld [vmem:[%s5 + $0x278] sm:$0xff]
    %v513 = vld [vmem:[%s5 + $0x2b0] sm:$0xff]
    %v514 = vld [vmem:[%s5 + $0x2e8] sm:$0xff]
    %v515 = vld [vmem:[%s5 + $0x320] sm:$0xff]
    %v516 = vld [vmem:[%s5 + $0x358] sm:$0xff]
    %v517 = vld [vmem:[%s5 + $0x390] sm:$0xff]
    %v518 = vld [vmem:[%s5 + $0x3c8] sm:$0xff]
    %v519 = vld [vmem:[%s5 + $0x400] sm:$0xff]
    %v520 = vld [vmem:[%s5 + $0x438] sm:$0xff]
    %v521 = vld [vmem:[%s5 + $0x470] sm:$0xff]
    %v522 = vld [vmem:[%s5 + $0x4a8] sm:$0xff]
    %v523 = vld [vmem:[%s5 + $0x4e0] sm:$0xff]
    %v524 = vld [vmem:[%s5 + $0x518] sm:$0xff]
    %v525 = vld [vmem:[%s5 + $0x550] sm:$0xff]
    %v526 = vld [vmem:[%s5 + $0x588] sm:$0xff]
    %v527 = vld [vmem:[%s5 + $0x5c0] sm:$0xff]
    %v528 = vld [vmem:[%s5 + $0x5f8] sm:$0xff]
    %v529 = vld [vmem:[%s5 + $0x630] sm:$0xff]
    %v530 = vld [vmem:[%s5 + $0x668] sm:$0xff]
    %v531 = vld [vmem:[%s5 + $0x6a0] sm:$0xff]
    %v532 = vld [vmem:[%s5 + $0x6d8] sm:$0xff]
    %v533 = vld [vmem:[%s6 + $0x2] sm:$0x1]
    %v535 = vlaneseq
    %v536 = vshrl.u32 %v535, 7
    %v537 = vsub.s32 0, %v536
    %v538 = vrot.slane %v533, %v537
    %540 = vmatprep.subr.mxu0 0.0
    %541 = vmatpush1.msra.mxu0 %v501
    %542 = vmatprep.subr.mxu0 0.0
    %543 = vmatpush1.msra.mxu0 %v502
    %544 = vmatprep.subr.mxu0 0.0
    %545 = vmatpush1.msra.mxu0 %v503
    %546 = vmatprep.subr.mxu0 0.0
    %547 = vmatpush1.msra.mxu0 %v504
    %548 = vmatprep.subr.mxu0 0.0
    %549 = vmatpush1.msra.mxu0 %v505
    %550 = vmatprep.subr.mxu0 0.0
    %551 = vmatpush1.msra.mxu0 %v506
    %552 = vmatprep.subr.mxu0 0.0
    %553 = vmatpush1.msra.mxu0 %v507
    %554 = vmatprep.subr.mxu0 0.0
    %555 = vmatpush1.msra.mxu0 %v508
    %556 = vmatprep.subr.mxu0 0.0
    %557 = vmatpush1.msra.mxu0 %v509
    %558 = vmatprep.subr.mxu0 0.0
    %559 = vmatpush1.msra.mxu0 %v510
    %560 = vmatprep.subr.mxu0 0.0
    %561 = vmatpush1.msra.mxu0 %v511
    %562 = vmatprep.subr.mxu0 0.0
    %563 = vmatpush1.msra.mxu0 %v512
    %564 = vmatprep.subr.mxu0 0.0
    %565 = vmatpush1.msra.mxu0 %v513
    %566 = vmatprep.subr.mxu0 0.0
    %567 = vmatpush1.msra.mxu0 %v514
    %568 = vmatprep.subr.mxu0 0.0
    %569 = vmatpush1.msra.mxu0 %v515
    %570 = vmatprep.subr.mxu0 0.0
    %571 = vmatpush1.msra.mxu0 %v516
    %572 = vmatprep.subr.mxu0 0.0
    %573 = vmatpush1.msra.mxu0 %v517
    %574 = vmatprep.subr.mxu0 0.0
    %575 = vmatpush1.msra.mxu0 %v518
    %576 = vmatprep.subr.mxu0 0.0
    %577 = vmatpush1.msra.mxu0 %v519
    %578 = vmatprep.subr.mxu0 0.0
    %579 = vmatpush1.msra.mxu0 %v520
    %580 = vmatprep.subr.mxu0 0.0
    %581 = vmatpush1.msra.mxu0 %v521
    %582 = vmatprep.subr.mxu0 0.0
    %583 = vmatpush1.msra.mxu0 %v522
    %584 = vmatprep.subr.mxu0 0.0
    %585 = vmatpush1.msra.mxu0 %v523
    %586 = vmatprep.subr.mxu0 0.0
    %587 = vmatpush1.msra.mxu0 %v524
    %588 = vmatprep.subr.mxu0 0.0
    %589 = vmatpush1.msra.mxu0 %v525
    %590 = vmatprep.subr.mxu0 0.0
    %591 = vmatpush1.msra.mxu0 %v526
    %592 = vmatprep.subr.mxu0 0.0
    %593 = vmatpush1.msra.mxu0 %v527
    %594 = vmatprep.subr.mxu0 0.0
    %595 = vmatpush1.msra.mxu0 %v528
    %596 = vmatprep.subr.mxu0 0.0
    %597 = vmatpush1.msra.mxu0 %v529
    %598 = vmatprep.subr.mxu0 0.0
    %599 = vmatpush1.msra.mxu0 %v530
    %600 = vmatprep.subr.mxu0 0.0
    %601 = vmatpush1.msra.mxu0 %v531
    %602 = vmatprep.subr.mxu0 0.0
    %603 = vmatpush1.msra.mxu0 %v532
    %604 = vmatprep.mubr.f32.mxu0 %v262
    %605 = vmatmul.mubr.f32.gmra.mrb[0].mxu0 %v261
    %v606 = vpop.f32.mrb[0].mxu0
    %v607 = vadd.f32 %v538, %v606
    %v608 = vpop.f32.mrb[0].mxu0
    %609 = vmatprep.mubr.f32.mxu0 %v264
    %610 = vmatmul.mubr.f32.gmra.mrb[0].mxu0 %v263
    %v611 = vpop.f32.mrb[0].mxu0
    %v612 = vadd.f32 %v538, %v611
    %v613 = vpop.f32.mrb[0].mxu0
    %614 = vdwg.mxu0
    %v615 = vtanh.pop %v607
    %v616 = vtanh.pop %v612
    %617 = vst [vmem:[#allocation2 + $0x10] sm:$0xff] %v615
    %618 = vst [vmem:[#allocation2 + $0x48] sm:$0xff] %v616
    %v619 = vld [vmem:[%s5 + $0x18] sm:$0xff]
    %v620 = vld [vmem:[%s5 + $0x50] sm:$0xff]
    %v621 = vld [vmem:[%s5 + $0x88] sm:$0xff]
    %v622 = vld [vmem:[%s5 + $0xc0] sm:$0xff]
    %v623 = vld [vmem:[%s5 + $0xf8] sm:$0xff]
    %v624 = vld [vmem:[%s5 + $0x130] sm:$0xff]
    %v625 = vld [vmem:[%s5 + $0x168] sm:$0xff]
    %v626 = vld [vmem:[%s5 + $0x1a0] sm:$0xff]
    %v627 = vld [vmem:[%s5 + $0x1d8] sm:$0xff]
    %v628 = vld [vmem:[%s5 + $0x210] sm:$0xff]
    %v629 = vld [vmem:[%s5 + $0x248] sm:$0xff]
    %v630 = vld [vmem:[%s5 + $0x280] sm:$0xff]
    %v631 = vld [vmem:[%s5 + $0x2b8] sm:$0xff]
    %v632 = vld [vmem:[%s5 + $0x2f0] sm:$0xff]
    %v633 = vld [vmem:[%s5 + $0x328] sm:$0xff]
    %v634 = vld [vmem:[%s5 + $0x360] sm:$0xff]
    %v635 = vld [vmem:[%s5 + $0x398] sm:$0xff]
    %v636 = vld [vmem:[%s5 + $0x3d0] sm:$0xff]
    %v637 = vld [vmem:[%s5 + $0x408] sm:$0xff]
    %v638 = vld [vmem:[%s5 + $0x440] sm:$0xff]
    %v639 = vld [vmem:[%s5 + $0x478] sm:$0xff]
    %v640 = vld [vmem:[%s5 + $0x4b0] sm:$0xff]
    %v641 = vld [vmem:[%s5 + $0x4e8] sm:$0xff]
    %v642 = vld [vmem:[%s5 + $0x520] sm:$0xff]
    %v643 = vld [vmem:[%s5 + $0x558] sm:$0xff]
    %v644 = vld [vmem:[%s5 + $0x590] sm:$0xff]
    %v645 = vld [vmem:[%s5 + $0x5c8] sm:$0xff]
    %v646 = vld [vmem:[%s5 + $0x600] sm:$0xff]
    %v647 = vld [vmem:[%s5 + $0x638] sm:$0xff]
    %v648 = vld [vmem:[%s5 + $0x670] sm:$0xff]
    %v649 = vld [vmem:[%s5 + $0x6a8] sm:$0xff]
    %v650 = vld [vmem:[%s5 + $0x6e0] sm:$0xff]
    %v651 = vld [vmem:[%s6 + $0x3] sm:$0x1]
    %v653 = vlaneseq
    %v654 = vshrl.u32 %v653, 7
    %v655 = vsub.s32 0, %v654
    %v656 = vrot.slane %v651, %v655
    %658 = vmatprep.subr.mxu0 0.0
    %659 = vmatpush1.msra.mxu0 %v619
    %660 = vmatprep.subr.mxu0 0.0
    %661 = vmatpush1.msra.mxu0 %v620
    %662 = vmatprep.subr.mxu0 0.0
    %663 = vmatpush1.msra.mxu0 %v621
    %664 = vmatprep.subr.mxu0 0.0
    %665 = vmatpush1.msra.mxu0 %v622
    %666 = vmatprep.subr.mxu0 0.0
    %667 = vmatpush1.msra.mxu0 %v623
    %668 = vmatprep.subr.mxu0 0.0
    %669 = vmatpush1.msra.mxu0 %v624
    %670 = vmatprep.subr.mxu0 0.0
    %671 = vmatpush1.msra.mxu0 %v625
    %672 = vmatprep.subr.mxu0 0.0
    %673 = vmatpush1.msra.mxu0 %v626
    %674 = vmatprep.subr.mxu0 0.0
    %675 = vmatpush1.msra.mxu0 %v627
    %676 = vmatprep.subr.mxu0 0.0
    %677 = vmatpush1.msra.mxu0 %v628
    %678 = vmatprep.subr.mxu0 0.0
    %679 = vmatpush1.msra.mxu0 %v629
    %680 = vmatprep.subr.mxu0 0.0
    %681 = vmatpush1.msra.mxu0 %v630
    %682 = vmatprep.subr.mxu0 0.0
    %683 = vmatpush1.msra.mxu0 %v631
    %684 = vmatprep.subr.mxu0 0.0
    %685 = vmatpush1.msra.mxu0 %v632
    %686 = vmatprep.subr.mxu0 0.0
    %687 = vmatpush1.msra.mxu0 %v633
    %688 = vmatprep.subr.mxu0 0.0
    %689 = vmatpush1.msra.mxu0 %v634
    %690 = vmatprep.subr.mxu0 0.0
    %691 = vmatpush1.msra.mxu0 %v635
    %692 = vmatprep.subr.mxu0 0.0
    %693 = vmatpush1.msra.mxu0 %v636
    %694 = vmatprep.subr.mxu0 0.0
    %695 = vmatpush1.msra.mxu0 %v637
    %696 = vmatprep.subr.mxu0 0.0
    %697 = vmatpush1.msra.mxu0 %v638
    %698 = vmatprep.subr.mxu0 0.0
    %699 = vmatpush1.msra.mxu0 %v639
    %700 = vmatprep.subr.mxu0 0.0
    %701 = vmatpush1.msra.mxu0 %v640
    %702 = vmatprep.subr.mxu0 0.0
    %703 = vmatpush1.msra.mxu0 %v641
    %704 = vmatprep.subr.mxu0 0.0
    %705 = vmatpush1.msra.mxu0 %v642
    %706 = vmatprep.subr.mxu0 0.0
    %707 = vmatpush1.msra.mxu0 %v643
    %708 = vmatprep.subr.mxu0 0.0
    %709 = vmatpush1.msra.mxu0 %v644
    %710 = vmatprep.subr.mxu0 0.0
    %711 = vmatpush1.msra.mxu0 %v645
    %712 = vmatprep.subr.mxu0 0.0
    %713 = vmatpush1.msra.mxu0 %v646
    %714 = vmatprep.subr.mxu0 0.0
    %715 = vmatpush1.msra.mxu0 %v647
    %716 = vmatprep.subr.mxu0 0.0
    %717 = vmatpush1.msra.mxu0 %v648
    %718 = vmatprep.subr.mxu0 0.0
    %719 = vmatpush1.msra.mxu0 %v649
    %720 = vmatprep.subr.mxu0 0.0
    %721 = vmatpush1.msra.mxu0 %v650
    %722 = vmatprep.mubr.f32.mxu0 %v262
    %723 = vmatmul.mubr.f32.gmra.mrb[0].mxu0 %v261
    %v724 = vpop.f32.mrb[0].mxu0
    %v725 = vadd.f32 %v656, %v724
    %v726 = vpop.f32.mrb[0].mxu0
    %727 = vmatprep.mubr.f32.mxu0 %v264
    %728 = vmatmul.mubr.f32.gmra.mrb[0].mxu0 %v263
    %v729 = vpop.f32.mrb[0].mxu0
    %v730 = vadd.f32 %v656, %v729
    %v731 = vpop.f32.mrb[0].mxu0
    %732 = vdwg.mxu0
    %v733 = vtanh.pop %v725
    %v734 = vtanh.pop %v730
    %735 = vst [vmem:[#allocation2 + $0x18] sm:$0xff] %v733
    %736 = vst [vmem:[#allocation2 + $0x50] sm:$0xff] %v734
    %v737 = vld [vmem:[%s5 + $0x20] sm:$0xff]
    %v738 = vld [vmem:[%s5 + $0x58] sm:$0xff]
    %v739 = vld [vmem:[%s5 + $0x90] sm:$0xff]
    %v740 = vld [vmem:[%s5 + $0xc8] sm:$0xff]
    %v741 = vld [vmem:[%s5 + $0x100] sm:$0xff]
    %v742 = vld [vmem:[%s5 + $0x138] sm:$0xff]
    %v743 = vld [vmem:[%s5 + $0x170] sm:$0xff]
    %v744 = vld [vmem:[%s5 + $0x1a8] sm:$0xff]
    %v745 = vld [vmem:[%s5 + $0x1e0] sm:$0xff]
    %v746 = vld [vmem:[%s5 + $0x218] sm:$0xff]
    %v747 = vld [vmem:[%s5 + $0x250] sm:$0xff]
    %v748 = vld [vmem:[%s5 + $0x288] sm:$0xff]
    %v749 = vld [vmem:[%s5 + $0x2c0] sm:$0xff]
    %v750 = vld [vmem:[%s5 + $0x2f8] sm:$0xff]
    %v751 = vld [vmem:[%s5 + $0x330] sm:$0xff]
    %v752 = vld [vmem:[%s5 + $0x368] sm:$0xff]
    %v753 = vld [vmem:[%s5 + $0x3a0] sm:$0xff]
    %v754 = vld [vmem:[%s5 + $0x3d8] sm:$0xff]
    %v755 = vld [vmem:[%s5 + $0x410] sm:$0xff]
    %v756 = vld [vmem:[%s5 + $0x448] sm:$0xff]
    %v757 = vld [vmem:[%s5 + $0x480] sm:$0xff]
    %v758 = vld [vmem:[%s5 + $0x4b8] sm:$0xff]
    %v759 = vld [vmem:[%s5 + $0x4f0] sm:$0xff]
    %v760 = vld [vmem:[%s5 + $0x528] sm:$0xff]
    %v761 = vld [vmem:[%s5 + $0x560] sm:$0xff]
    %v762 = vld [vmem:[%s5 + $0x598] sm:$0xff]
    %v763 = vld [vmem:[%s5 + $0x5d0] sm:$0xff]
    %v764 = vld [vmem:[%s5 + $0x608] sm:$0xff]
    %v765 = vld [vmem:[%s5 + $0x640] sm:$0xff]
    %v766 = vld [vmem:[%s5 + $0x678] sm:$0xff]
    %v767 = vld [vmem:[%s5 + $0x6b0] sm:$0xff]
    %v768 = vld [vmem:[%s5 + $0x6e8] sm:$0xff]
    %v769 = vld [vmem:[%s6 + $0x4] sm:$0x1]
    %v771 = vlaneseq
    %v772 = vshrl.u32 %v771, 7
    %v773 = vsub.s32 0, %v772
    %v774 = vrot.slane %v769, %v773
    %776 = vmatprep.subr.mxu0 0.0
    %777 = vmatpush1.msra.mxu0 %v737
    %778 = vmatprep.subr.mxu0 0.0
    %779 = vmatpush1.msra.mxu0 %v738
    %780 = vmatprep.subr.mxu0 0.0
    %781 = vmatpush1.msra.mxu0 %v739
    %782 = vmatprep.subr.mxu0 0.0
    %783 = vmatpush1.msra.mxu0 %v740
    %784 = vmatprep.subr.mxu0 0.0
    %785 = vmatpush1.msra.mxu0 %v741
    %786 = vmatprep.subr.mxu0 0.0
    %787 = vmatpush1.msra.mxu0 %v742
    %788 = vmatprep.subr.mxu0 0.0
    %789 = vmatpush1.msra.mxu0 %v743
    %790 = vmatprep.subr.mxu0 0.0
    %791 = vmatpush1.msra.mxu0 %v744
    %792 = vmatprep.subr.mxu0 0.0
    %793 = vmatpush1.msra.mxu0 %v745
    %794 = vmatprep.subr.mxu0 0.0
    %795 = vmatpush1.msra.mxu0 %v746
    %796 = vmatprep.subr.mxu0 0.0
    %797 = vmatpush1.msra.mxu0 %v747
    %798 = vmatprep.subr.mxu0 0.0
    %799 = vmatpush1.msra.mxu0 %v748
    %800 = vmatprep.subr.mxu0 0.0
    %801 = vmatpush1.msra.mxu0 %v749
    %802 = vmatprep.subr.mxu0 0.0
    %803 = vmatpush1.msra.mxu0 %v750
    %804 = vmatprep.subr.mxu0 0.0
    %805 = vmatpush1.msra.mxu0 %v751
    %806 = vmatprep.subr.mxu0 0.0
    %807 = vmatpush1.msra.mxu0 %v752
    %808 = vmatprep.subr.mxu0 0.0
    %809 = vmatpush1.msra.mxu0 %v753
    %810 = vmatprep.subr.mxu0 0.0
    %811 = vmatpush1.msra.mxu0 %v754
    %812 = vmatprep.subr.mxu0 0.0
    %813 = vmatpush1.msra.mxu0 %v755
    %814 = vmatprep.subr.mxu0 0.0
    %815 = vmatpush1.msra.mxu0 %v756
    %816 = vmatprep.subr.mxu0 0.0
    %817 = vmatpush1.msra.mxu0 %v757
    %818 = vmatprep.subr.mxu0 0.0
    %819 = vmatpush1.msra.mxu0 %v758
    %820 = vmatprep.subr.mxu0 0.0
    %821 = vmatpush1.msra.mxu0 %v759
    %822 = vmatprep.subr.mxu0 0.0
    %823 = vmatpush1.msra.mxu0 %v760
    %824 = vmatprep.subr.mxu0 0.0
    %825 = vmatpush1.msra.mxu0 %v761
    %826 = vmatprep.subr.mxu0 0.0
    %827 = vmatpush1.msra.mxu0 %v762
    %828 = vmatprep.subr.mxu0 0.0
    %829 = vmatpush1.msra.mxu0 %v763
    %830 = vmatprep.subr.mxu0 0.0
    %831 = vmatpush1.msra.mxu0 %v764
    %832 = vmatprep.subr.mxu0 0.0
    %833 = vmatpush1.msra.mxu0 %v765
    %834 = vmatprep.subr.mxu0 0.0
    %835 = vmatpush1.msra.mxu0 %v766
    %836 = vmatprep.subr.mxu0 0.0
    %837 = vmatpush1.msra.mxu0 %v767
    %838 = vmatprep.subr.mxu0 0.0
    %839 = vmatpush1.msra.mxu0 %v768
    %840 = vmatprep.mubr.f32.mxu0 %v262
    %841 = vmatmul.mubr.f32.gmra.mrb[0].mxu0 %v261
    %v842 = vpop.f32.mrb[0].mxu0
    %v843 = vadd.f32 %v774, %v842
    %v844 = vpop.f32.mrb[0].mxu0
    %845 = vmatprep.mubr.f32.mxu0 %v264
    %846 = vmatmul.mubr.f32.gmra.mrb[0].mxu0 %v263
    %v847 = vpop.f32.mrb[0].mxu0
    %v848 = vadd.f32 %v774, %v847
    %v849 = vpop.f32.mrb[0].mxu0
    %850 = vdwg.mxu0
    %v851 = vtanh.pop %v843
    %v852 = vtanh.pop %v848
    %853 = vst [vmem:[#allocation2 + $0x20] sm:$0xff] %v851
    %854 = vst [vmem:[#allocation2 + $0x58] sm:$0xff] %v852
    %v855 = vld [vmem:[%s5 + $0x28] sm:$0xff]
    %v856 = vld [vmem:[%s5 + $0x60] sm:$0xff]
    %v857 = vld [vmem:[%s5 + $0x98] sm:$0xff]
    %v858 = vld [vmem:[%s5 + $0xd0] sm:$0xff]
    %v859 = vld [vmem:[%s5 + $0x108] sm:$0xff]
    %v860 = vld [vmem:[%s5 + $0x140] sm:$0xff]
    %v861 = vld [vmem:[%s5 + $0x178] sm:$0xff]
    %v862 = vld [vmem:[%s5 + $0x1b0] sm:$0xff]
    %v863 = vld [vmem:[%s5 + $0x1e8] sm:$0xff]
    %v864 = vld [vmem:[%s5 + $0x220] sm:$0xff]
    %v865 = vld [vmem:[%s5 + $0x258] sm:$0xff]
    %v866 = vld [vmem:[%s5 + $0x290] sm:$0xff]
    %v867 = vld [vmem:[%s5 + $0x2c8] sm:$0xff]
    %v868 = vld [vmem:[%s5 + $0x300] sm:$0xff]
    %v869 = vld [vmem:[%s5 + $0x338] sm:$0xff]
    %v870 = vld [vmem:[%s5 + $0x370] sm:$0xff]
    %v871 = vld [vmem:[%s5 + $0x3a8] sm:$0xff]
    %v872 = vld [vmem:[%s5 + $0x3e0] sm:$0xff]
    %v873 = vld [vmem:[%s5 + $0x418] sm:$0xff]
    %v874 = vld [vmem:[%s5 + $0x450] sm:$0xff]
    %v875 = vld [vmem:[%s5 + $0x488] sm:$0xff]
    %v876 = vld [vmem:[%s5 + $0x4c0] sm:$0xff]
    %v877 = vld [vmem:[%s5 + $0x4f8] sm:$0xff]
    %v878 = vld [vmem:[%s5 + $0x530] sm:$0xff]
    %v879 = vld [vmem:[%s5 + $0x568] sm:$0xff]
    %v880 = vld [vmem:[%s5 + $0x5a0] sm:$0xff]
    %v881 = vld [vmem:[%s5 + $0x5d8] sm:$0xff]
    %v882 = vld [vmem:[%s5 + $0x610] sm:$0xff]
    %v883 = vld [vmem:[%s5 + $0x648] sm:$0xff]
    %v884 = vld [vmem:[%s5 + $0x680] sm:$0xff]
    %v885 = vld [vmem:[%s5 + $0x6b8] sm:$0xff]
    %v886 = vld [vmem:[%s5 + $0x6f0] sm:$0xff]
    %v887 = vld [vmem:[%s6 + $0x5] sm:$0x1]
    %v889 = vlaneseq
    %v890 = vshrl.u32 %v889, 7
    %v891 = vsub.s32 0, %v890
    %v892 = vrot.slane %v887, %v891
    %894 = vmatprep.subr.mxu0 0.0
    %895 = vmatpush1.msra.mxu0 %v855
    %896 = vmatprep.subr.mxu0 0.0
    %897 = vmatpush1.msra.mxu0 %v856
    %898 = vmatprep.subr.mxu0 0.0
    %899 = vmatpush1.msra.mxu0 %v857
    %900 = vmatprep.subr.mxu0 0.0
    %901 = vmatpush1.msra.mxu0 %v858
    %902 = vmatprep.subr.mxu0 0.0
    %903 = vmatpush1.msra.mxu0 %v859
    %904 = vmatprep.subr.mxu0 0.0
    %905 = vmatpush1.msra.mxu0 %v860
    %906 = vmatprep.subr.mxu0 0.0
    %907 = vmatpush1.msra.mxu0 %v861
    %908 = vmatprep.subr.mxu0 0.0
    %909 = vmatpush1.msra.mxu0 %v862
    %910 = vmatprep.subr.mxu0 0.0
    %911 = vmatpush1.msra.mxu0 %v863
    %912 = vmatprep.subr.mxu0 0.0
    %913 = vmatpush1.msra.mxu0 %v864
    %914 = vmatprep.subr.mxu0 0.0
    %915 = vmatpush1.msra.mxu0 %v865
    %916 = vmatprep.subr.mxu0 0.0
    %917 = vmatpush1.msra.mxu0 %v866
    %918 = vmatprep.subr.mxu0 0.0
    %919 = vmatpush1.msra.mxu0 %v867
    %920 = vmatprep.subr.mxu0 0.0
    %921 = vmatpush1.msra.mxu0 %v868
    %922 = vmatprep.subr.mxu0 0.0
    %923 = vmatpush1.msra.mxu0 %v869
    %924 = vmatprep.subr.mxu0 0.0
    %925 = vmatpush1.msra.mxu0 %v870
    %926 = vmatprep.subr.mxu0 0.0
    %927 = vmatpush1.msra.mxu0 %v871
    %928 = vmatprep.subr.mxu0 0.0
    %929 = vmatpush1.msra.mxu0 %v872
    %930 = vmatprep.subr.mxu0 0.0
    %931 = vmatpush1.msra.mxu0 %v873
    %932 = vmatprep.subr.mxu0 0.0
    %933 = vmatpush1.msra.mxu0 %v874
    %934 = vmatprep.subr.mxu0 0.0
    %935 = vmatpush1.msra.mxu0 %v875
    %936 = vmatprep.subr.mxu0 0.0
    %937 = vmatpush1.msra.mxu0 %v876
    %938 = vmatprep.subr.mxu0 0.0
    %939 = vmatpush1.msra.mxu0 %v877
    %940 = vmatprep.subr.mxu0 0.0
    %941 = vmatpush1.msra.mxu0 %v878
    %942 = vmatprep.subr.mxu0 0.0
    %943 = vmatpush1.msra.mxu0 %v879
    %944 = vmatprep.subr.mxu0 0.0
    %945 = vmatpush1.msra.mxu0 %v880
    %946 = vmatprep.subr.mxu0 0.0
    %947 = vmatpush1.msra.mxu0 %v881
    %948 = vmatprep.subr.mxu0 0.0
    %949 = vmatpush1.msra.mxu0 %v882
    %950 = vmatprep.subr.mxu0 0.0
    %951 = vmatpush1.msra.mxu0 %v883
    %952 = vmatprep.subr.mxu0 0.0
    %953 = vmatpush1.msra.mxu0 %v884
    %954 = vmatprep.subr.mxu0 0.0
    %955 = vmatpush1.msra.mxu0 %v885
    %956 = vmatprep.subr.mxu0 0.0
    %957 = vmatpush1.msra.mxu0 %v886
    %958 = vmatprep.mubr.f32.mxu0 %v262
    %959 = vmatmul.mubr.f32.gmra.mrb[0].mxu0 %v261
    %v960 = vpop.f32.mrb[0].mxu0
    %v961 = vadd.f32 %v892, %v960
    %v962 = vpop.f32.mrb[0].mxu0
    %963 = vmatprep.mubr.f32.mxu0 %v264
    %964 = vmatmul.mubr.f32.gmra.mrb[0].mxu0 %v263
    %v965 = vpop.f32.mrb[0].mxu0
    %v966 = vadd.f32 %v892, %v965
    %v967 = vpop.f32.mrb[0].mxu0
    %968 = vdwg.mxu0
    %v969 = vtanh.pop %v961
    %v970 = vtanh.pop %v966
    %971 = vst [vmem:[#allocation2 + $0x28] sm:$0xff] %v969
    %972 = vst [vmem:[#allocation2 + $0x60] sm:$0xff] %v970
    %v973 = vld [vmem:[%s5 + $0x30] sm:$0xff]
    %v974 = vld [vmem:[%s5 + $0x68] sm:$0xff]
    %v975 = vld [vmem:[%s5 + $0xa0] sm:$0xff]
    %v976 = vld [vmem:[%s5 + $0xd8] sm:$0xff]
    %v977 = vld [vmem:[%s5 + $0x110] sm:$0xff]
    %v978 = vld [vmem:[%s5 + $0x148] sm:$0xff]
    %v979 = vld [vmem:[%s5 + $0x180] sm:$0xff]
    %v980 = vld [vmem:[%s5 + $0x1b8] sm:$0xff]
    %v981 = vld [vmem:[%s5 + $0x1f0] sm:$0xff]
    %v982 = vld [vmem:[%s5 + $0x228] sm:$0xff]
    %v983 = vld [vmem:[%s5 + $0x260] sm:$0xff]
    %v984 = vld [vmem:[%s5 + $0x298] sm:$0xff]
    %v985 = vld [vmem:[%s5 + $0x2d0] sm:$0xff]
    %v986 = vld [vmem:[%s5 + $0x308] sm:$0xff]
    %v987 = vld [vmem:[%s5 + $0x340] sm:$0xff]
    %v988 = vld [vmem:[%s5 + $0x378] sm:$0xff]
    %v989 = vld [vmem:[%s5 + $0x3b0] sm:$0xff]
    %v990 = vld [vmem:[%s5 + $0x3e8] sm:$0xff]
    %v991 = vld [vmem:[%s5 + $0x420] sm:$0xff]
    %v992 = vld [vmem:[%s5 + $0x458] sm:$0xff]
    %v993 = vld [vmem:[%s5 + $0x490] sm:$0xff]
    %v994 = vld [vmem:[%s5 + $0x4c8] sm:$0xff]
    %v995 = vld [vmem:[%s5 + $0x500] sm:$0xff]
    %v996 = vld [vmem:[%s5 + $0x538] sm:$0xff]
    %v997 = vld [vmem:[%s5 + $0x570] sm:$0xff]
    %v998 = vld [vmem:[%s5 + $0x5a8] sm:$0xff]
    %v999 = vld [vmem:[%s5 + $0x5e0] sm:$0xff]
    %v1000 = vld [vmem:[%s5 + $0x618] sm:$0xff]
    %v1001 = vld [vmem:[%s5 + $0x650] sm:$0xff]
    %v1002 = vld [vmem:[%s5 + $0x688] sm:$0xff]
    %v1003 = vld [vmem:[%s5 + $0x6c0] sm:$0xff]
    %v1004 = vld [vmem:[%s5 + $0x6f8] sm:$0xff]
    %v1005 = vld [vmem:[%s6 + $0x6] sm:$0x1]
    %v1007 = vlaneseq
    %v1008 = vshrl.u32 %v1007, 7
    %v1009 = vsub.s32 0, %v1008
    %v1010 = vrot.slane %v1005, %v1009
    %1012 = vmatprep.subr.mxu0 0.0
    %1013 = vmatpush1.msra.mxu0 %v973
    %1014 = vmatprep.subr.mxu0 0.0
    %1015 = vmatpush1.msra.mxu0 %v974
    %1016 = vmatprep.subr.mxu0 0.0
    %1017 = vmatpush1.msra.mxu0 %v975
    %1018 = vmatprep.subr.mxu0 0.0
    %1019 = vmatpush1.msra.mxu0 %v976
    %1020 = vmatprep.subr.mxu0 0.0
    %1021 = vmatpush1.msra.mxu0 %v977
    %1022 = vmatprep.subr.mxu0 0.0
    %1023 = vmatpush1.msra.mxu0 %v978
    %1024 = vmatprep.subr.mxu0 0.0
    %1025 = vmatpush1.msra.mxu0 %v979
    %1026 = vmatprep.subr.mxu0 0.0
    %1027 = vmatpush1.msra.mxu0 %v980
    %1028 = vmatprep.subr.mxu0 0.0
    %1029 = vmatpush1.msra.mxu0 %v981
    %1030 = vmatprep.subr.mxu0 0.0
    %1031 = vmatpush1.msra.mxu0 %v982
    %1032 = vmatprep.subr.mxu0 0.0
    %1033 = vmatpush1.msra.mxu0 %v983
    %1034 = vmatprep.subr.mxu0 0.0
    %1035 = vmatpush1.msra.mxu0 %v984
    %1036 = vmatprep.subr.mxu0 0.0
    %1037 = vmatpush1.msra.mxu0 %v985
    %1038 = vmatprep.subr.mxu0 0.0
    %1039 = vmatpush1.msra.mxu0 %v986
    %1040 = vmatprep.subr.mxu0 0.0
    %1041 = vmatpush1.msra.mxu0 %v987
    %1042 = vmatprep.subr.mxu0 0.0
    %1043 = vmatpush1.msra.mxu0 %v988
    %1044 = vmatprep.subr.mxu0 0.0
    %1045 = vmatpush1.msra.mxu0 %v989
    %1046 = vmatprep.subr.mxu0 0.0
    %1047 = vmatpush1.msra.mxu0 %v990
    %1048 = vmatprep.subr.mxu0 0.0
    %1049 = vmatpush1.msra.mxu0 %v991
    %1050 = vmatprep.subr.mxu0 0.0
    %1051 = vmatpush1.msra.mxu0 %v992
    %1052 = vmatprep.subr.mxu0 0.0
    %1053 = vmatpush1.msra.mxu0 %v993
    %1054 = vmatprep.subr.mxu0 0.0
    %1055 = vmatpush1.msra.mxu0 %v994
    %1056 = vmatprep.subr.mxu0 0.0
    %1057 = vmatpush1.msra.mxu0 %v995
    %1058 = vmatprep.subr.mxu0 0.0
    %1059 = vmatpush1.msra.mxu0 %v996
    %1060 = vmatprep.subr.mxu0 0.0
    %1061 = vmatpush1.msra.mxu0 %v997
    %1062 = vmatprep.subr.mxu0 0.0
    %1063 = vmatpush1.msra.mxu0 %v998
    %1064 = vmatprep.subr.mxu0 0.0
    %1065 = vmatpush1.msra.mxu0 %v999
    %1066 = vmatprep.subr.mxu0 0.0
    %1067 = vmatpush1.msra.mxu0 %v1000
    %1068 = vmatprep.subr.mxu0 0.0
    %1069 = vmatpush1.msra.mxu0 %v1001
    %1070 = vmatprep.subr.mxu0 0.0
    %1071 = vmatpush1.msra.mxu0 %v1002
    %1072 = vmatprep.subr.mxu0 0.0
    %1073 = vmatpush1.msra.mxu0 %v1003
    %1074 = vmatprep.subr.mxu0 0.0
    %1075 = vmatpush1.msra.mxu0 %v1004
    %1076 = vmatprep.mubr.f32.mxu0 %v262
    %1077 = vmatmul.mubr.f32.gmra.mrb[0].mxu0 %v261
    %v1078 = vpop.f32.mrb[0].mxu0
    %v1079 = vadd.f32 %v1010, %v1078
    %v1080 = vpop.f32.mrb[0].mxu0
    %1081 = vmatprep.mubr.f32.mxu0 %v264
    %1082 = vmatmul.mubr.f32.gmra.mrb[0].mxu0 %v263
    %v1083 = vpop.f32.mrb[0].mxu0
    %v1084 = vadd.f32 %v1010, %v1083
    %v1085 = vpop.f32.mrb[0].mxu0
    %1086 = vdwg.mxu0
    %v1087 = vtanh.pop %v1079
    %v1088 = vtanh.pop %v1084
    %1089 = vst [vmem:[#allocation2 + $0x30] sm:$0xff] %v1087
    %1090 = vst [vmem:[#allocation2 + $0x68] sm:$0xff] %v1088
    // Predicated region
    $region30: #{generator_forward.1} parent=1 // pred_check
      _
    $region31: #{generator_forward.1} parent=1 // pred_check_branch
      %1092 = sbr.rel (0) target = $region33
    $region32: #{generator_forward.1} parent=1 // pred_region
      %s1094 = ssub.s32 1792, 1792
      %1095 = vsyncadd [#allocation3], %s1094
      %s1096 = sshll.u32 [#allocation2], 4
      %s1097 = int_to_ptr.vmem [resolvable:$true] %s1096
      %1102 = dma.vmem_to_hbm [thread:$0]  %s1097, 1792, %s7, [#allocation3], 896, 896, 56
    $region33: #{generator_forward.1} parent=1 // pred_fallthru
      _
    // Predicated region
    $region34: #{generator_forward.1} parent=1 // pred_check
      _
    $region35: #{generator_forward.1} parent=1 // pred_check_branch
      %1104 = sbr.rel (0) target = $region37
    $region36: #{generator_forward.1} parent=1 // pred_region
      %1105 = dma.done [#allocation3], 1792
    $region37: #{generator_forward.1} parent=1 // pred_fallthru
      _
    %1106 = vsyncpa [#allocation3], 1

</llo_original>
